<compile_context>
chip_gen: v6e
topology: v6e:2x2x1
jax: 0.10.0
libtpu: 0.0.40
codegen_flags: <defaults>
</compile_context>

<pallas_src>
import jax
import jax.numpy as jnp
from jax.experimental import pallas as pl
from jax.experimental.pallas import tpu as pltpu


def _bce_partial_kernel(pred_ref, y_ref, w_ref, partial_ref):
    # pred_ref / y_ref : (TB, S, H)   w_ref : (S, H)   partial_ref : (1, S, H)
    x = pred_ref[...].astype(jnp.float32)
    z = y_ref[...].astype(jnp.float32)
    w = w_ref[...].astype(jnp.float32)

    # Numerically-stable BCE-with-logits (same formulation as PyTorch):
    #   loss = max(x, 0) - x*z + log1p(exp(-|x|))
    loss = jnp.maximum(x, 0.0) - x * z + jnp.log1p(jnp.exp(-jnp.abs(x)))
    loss = loss * w[None, :, :]

    # Reduce only over the leading (batch) axis: TB elementwise VPU adds,
    # result stays lane-dense (S, H).  The full cross-lane reduction is done
    # exactly once, outside the kernel.
    partial_ref[...] = jnp.sum(loss, axis=0, keepdims=True)


def _choose_batch_tile(B, S, H, itemsize, target_bytes=2 * 1024 * 1024):
    """Largest divisor of B whose (TB, S, H) input block fits `target_bytes`.

    Using a divisor of B avoids ragged last blocks (no padding / masking), and
    ~2 MiB per input keeps 2 inputs x 2 pipeline buffers comfortably inside the
    default scoped VMEM on v5e/v6e and v7x while saturating HBM bandwidth.
    """
    per_row = S * H * itemsize
    best = 1
    for tb in range(1, B + 1):
        if B % tb == 0 and tb * per_row <= target_bytes:
            best = tb
    return best


def bce_with_logit_loss_with_mask(prediction, y, mask):
    """Pallas equivalent of BCEWithLogitLossWithMask.forward."""
    B, S, H = prediction.shape
    weight = mask[0]                      # (S, H) — exactly what the module uses
    total = float(B * S * H)

    TB = _choose_batch_tile(B, S, H, jnp.dtype(prediction.dtype).itemsize)
    num_blocks = B // TB

    partials = pl.pallas_call(
        _bce_partial_kernel,
        out_shape=jax.ShapeDtypeStruct((num_blocks, S, H), jnp.float32),
        grid_spec=pltpu.PrefetchScalarGridSpec(
            num_scalar_prefetch=0,
            grid=(num_blocks,),
            in_specs=[
                pl.BlockSpec((TB, S, H), lambda b: (b, 0, 0)),
                pl.BlockSpec((TB, S, H), lambda b: (b, 0, 0)),
                pl.BlockSpec((S, H), lambda b: (0, 0)),   # weight stays resident
            ],
            out_specs=pl.BlockSpec((1, S, H), lambda b: (b, 0, 0)),
        ),
        compiler_params=pltpu.CompilerParams(
            # Each step writes an independent partial -> grid is parallel, so
            # Mosaic may shard it across both TensorCores on v7x (neutral on
            # single-TC v5e/v6e).
            dimension_semantics=("parallel",),
        ),
    )(prediction, y, weight)

    # Final cross-lane reduce + mean: a few KiB of glue, done once in JAX.
    return jnp.sum(partials) / total


def _reference(prediction, y, mask):
    x = prediction.astype(jnp.float32)
    z = y.astype(jnp.float32)
    w = mask[0].astype(jnp.float32)
    loss = jnp.maximum(x, 0.0) - x * z + jnp.log1p(jnp.exp(-jnp.abs(x)))
    return jnp.mean(loss * w[None])


if __name__ == "__main__":
    key = jax.random.PRNGKey(0)
    k1, k2, k3 = jax.random.split(key, 3)

    B, S, H = 4, 8, 128
    prediction = jax.random.normal(k1, (B, S, H), dtype=jnp.float32)
    y = (jax.random.uniform(k2, (B, S, H)) > 0.5).astype(jnp.float32)
    # Mask of "input lengths": 1.0 for valid positions, 0.0 otherwise,
    # broadcast across the hidden dim.
    lengths = jax.random.randint(k3, (B,), 1, S + 1)
    mask = (jnp.arange(S)[None, :, None] < lengths[:, None, None]).astype(jnp.float32)
    mask = jnp.broadcast_to(mask, (B, S, H))

    out = bce_with_logit_loss_with_mask(prediction, y, mask)
    out = jax.block_until_ready(out)

    ref = _reference(prediction, y, mask)
    assert jnp.allclose(out, ref, rtol=1e-5, atol=1e-5), (out, ref)

    print("KERNEL_OK")
</pallas_src>

<mosaic_0001>
module attributes {stable_mosaic.version = 11 : i64} {
  func.func @_bce_partial_kernel(%arg0: i32, %arg1: memref<4x8x128xf32, #tpu.memory_space<vmem>>, %arg2: memref<4x8x128xf32, #tpu.memory_space<vmem>>, %arg3: memref<8x128xf32, #tpu.memory_space<vmem>>, %arg4: memref<1x8x128xf32, #tpu.memory_space<vmem>>) attributes {dimension_semantics = [#tpu.dimension_semantics<parallel>], iteration_bounds = array<i64: 1>, scalar_prefetch = 0 : i64, scratch_operands = 0 : i64, tpu.core_type = #tpu.core_type<tc>, window_params = [{transform_indices = @transform_0, window_bounds = array<i64: 4, 8, 128>}, {transform_indices = @transform_1, window_bounds = array<i64: 4, 8, 128>}, {pipeline_mode = #tpu.pipeline_mode<synchronous>, transform_indices = @transform_2, window_bounds = array<i64: 8, 128>}, {transform_indices = @transform_3, window_bounds = array<i64: 1, 8, 128>}]} {
    %c0 = arith.constant 0 : index
    %c0_0 = arith.constant 0 : index
    %c0_1 = arith.constant 0 : index
    %0 = vector.load %arg1[%c0, %c0_0, %c0_1] : memref<4x8x128xf32, #tpu.memory_space<vmem>>, vector<4x8x128xf32>
    %c0_2 = arith.constant 0 : index
    %c0_3 = arith.constant 0 : index
    %c0_4 = arith.constant 0 : index
    %1 = vector.load %arg2[%c0_2, %c0_3, %c0_4] : memref<4x8x128xf32, #tpu.memory_space<vmem>>, vector<4x8x128xf32>
    %c0_5 = arith.constant 0 : index
    %c0_6 = arith.constant 0 : index
    %2 = vector.load %arg3[%c0_5, %c0_6] : memref<8x128xf32, #tpu.memory_space<vmem>>, vector<8x128xf32>
    %cst = arith.constant 0.000000e+00 : f32
    %3 = vector.broadcast %cst : f32 to vector<4x8x128xf32>
    %4 = arith.maximumf %0, %3 : vector<4x8x128xf32>
    %5 = arith.mulf %0, %1 : vector<4x8x128xf32>
    %6 = arith.subf %4, %5 : vector<4x8x128xf32>
    %7 = math.absf %0 : vector<4x8x128xf32>
    %cst_7 = arith.constant 0.000000e+00 : f32
    %8 = vector.broadcast %cst_7 : f32 to vector<4x8x128xf32>
    %9 = arith.subf %8, %7 : vector<4x8x128xf32>
    %10 = math.exp %9 : vector<4x8x128xf32>
    %11 = math.log1p %10 : vector<4x8x128xf32>
    %12 = arith.addf %6, %11 : vector<4x8x128xf32>
    %13 = vector.shape_cast %2 : vector<8x128xf32> to vector<1x8x128xf32>
    %14 = vector.broadcast %13 : vector<1x8x128xf32> to vector<4x8x128xf32>
    %15 = arith.mulf %12, %14 : vector<4x8x128xf32>
    %cst_8 = arith.constant dense<0.000000e+00> : vector<8x128xf32>
    %16 = vector.multi_reduction <add>, %15, %cst_8 [0] : vector<4x8x128xf32> to vector<8x128xf32>
    %17 = vector.shape_cast %16 : vector<8x128xf32> to vector<1x8x128xf32>
    %c0_9 = arith.constant 0 : index
    %c0_10 = arith.constant 0 : index
    %c0_11 = arith.constant 0 : index
    %18 = vector.load %arg4[%c0_9, %c0_10, %c0_11] : memref<1x8x128xf32, #tpu.memory_space<vmem>>, vector<1x8x128xf32>
    tpu.vector_store %arg4[%c0_9, %c0_10, %c0_11], %17 {strides = array<i32>} : memref<1x8x128xf32, #tpu.memory_space<vmem>>, vector<1x8x128xf32>,
    return
  }
  func.func @transform_0(%arg0: i32) -> (i32, i32, i32) {
    %c0_i32 = arith.constant 0 : i32
    %c0_i32_0 = arith.constant 0 : i32
    %c0_i32_1 = arith.constant 0 : i32
    return %arg0, %c0_i32, %c0_i32_0 : i32, i32, i32
  }
  func.func @transform_1(%arg0: i32) -> (i32, i32, i32) {
    %c0_i32 = arith.constant 0 : i32
    %c0_i32_0 = arith.constant 0 : i32
    %c0_i32_1 = arith.constant 0 : i32
    return %arg0, %c0_i32, %c0_i32_0 : i32, i32, i32
  }
  func.func @transform_2(%arg0: i32) -> (i32, i32) {
    %c0_i32 = arith.constant 0 : i32
    %c0_i32_0 = arith.constant 0 : i32
    %c0_i32_1 = arith.constant 0 : i32
    return %c0_i32, %c0_i32_0 : i32, i32
  }
  func.func @transform_3(%arg0: i32) -> (i32, i32, i32) {
    %c0_i32 = arith.constant 0 : i32
    %c0_i32_0 = arith.constant 0 : i32
    %c0_i32_1 = arith.constant 0 : i32
    return %arg0, %c0_i32, %c0_i32_0 : i32, i32, i32
  }
}

</mosaic_0001>

<llo_original>
// kernel: tpu_custom_call.1
$region0: #{tpu_custom_call.1}
  #allocation0 [shape = 'u32[]', space=smem, size = 0x4, offset = 0x4, fixed_abs, tag = 'smem constant byte address 0x4 - core index']
  #allocation1 [shape = 'u32[144,128]{1,0:T(1,128)}', space=vmem, size = 0x12000, scoped, tag = 'internal scratch']
  %s0 = inlined_call_operand.hbm [shape: f32[4,8,128], index: 0, kind: input, shape index: {}]
  %s1 = inlined_call_operand.hbm [shape: f32[4,8,128], index: 1, kind: input, shape index: {}]
  %s2 = inlined_call_operand.hbm [shape: f32[8,128], index: 2, kind: input, shape index: {}]
  %s3 = inlined_call_operand.hbm [shape: f32[1,8,128], index: 3, kind: output, shape index: {}]
  %s4 = sld [smem:[#allocation0]]
  $region34: #{tpu_custom_call.1} parent=0
    _
  %s6 = ssub.s32 1, %s4
  %s7 = scalar_select 0, %s6, %s4
  $region1: #{tpu_custom_call.1} parent=0
    #allocation2 [shape = 'u8[16384]{0}', space=vmem, size = 0x4000, scoped, tag = 'input window, operand 0, single buffered']
    #allocation3 [shape = 's32[1]{0}', space=sflag, size = 0x4, scoped, tag = 'scoped memory for tpu_custom_call.1']
    #allocation4 [shape = 's32[1]{0}', space=sflag, size = 0x4, scoped, tag = 'scoped memory for tpu_custom_call.1']
    #allocation5 [shape = 'u8[16384]{0}', space=vmem, size = 0x4000, scoped, tag = 'input window, operand 1, single buffered']
    #allocation6 [shape = 's32[1]{0}', space=sflag, size = 0x4, scoped, tag = 'scoped memory for tpu_custom_call.1']
    #allocation7 [shape = 'u8[4096]{0}', space=vmem, size = 0x1000, scoped, tag = 'input window, operand 2, single buffered']
    #allocation8 [shape = 'u8[4096]{0}', space=vmem, size = 0x1000, scoped, tag = 'output window, operand 0, single buffered']
    %8 = vsyncpa [#allocation3], 0
    %9 = vsyncpa [#allocation6], 0
    %10 = vsyncpa [#allocation4], 0
    // Predicated region
    $region2: #{tpu_custom_call.1} parent=1 // pred_check
      _
    $region3: #{tpu_custom_call.1} parent=1 // pred_check_branch
      %12 = sbr.rel (0) target = $region5
    $region4: #{tpu_custom_call.1} parent=1 // pred_region
      %s14 = ssub.s32 512, 512
      %15 = vsyncadd [#allocation3], %s14
      %s16 = sshll.u32 [#allocation2], 4
      %s17 = int_to_ptr.vmem [resolvable:$true] %s16
      %22 = dma.hbm_to_vmem [thread:$0]  %s0, 512, %s17, [#allocation3], 128, 128, 8
    $region5: #{tpu_custom_call.1} parent=1 // pred_fallthru
      _
    // Predicated region
    $region6: #{tpu_custom_call.1} parent=1 // pred_check
      _
    $region7: #{tpu_custom_call.1} parent=1 // pred_check_branch
      %24 = sbr.rel (0) target = $region9
    $region8: #{tpu_custom_call.1} parent=1 // pred_region
      %s26 = ssub.s32 512, 512
      %27 = vsyncadd [#allocation6], %s26
      %s28 = sshll.u32 [#allocation5], 4
      %s29 = int_to_ptr.vmem [resolvable:$true] %s28
      %34 = dma.hbm_to_vmem [thread:$0]  %s1, 512, %s29, [#allocation6], 128, 128, 8
    $region9: #{tpu_custom_call.1} parent=1 // pred_fallthru
      _
    // Predicated region
    $region10: #{tpu_custom_call.1} parent=1 // pred_check
      _
    $region11: #{tpu_custom_call.1} parent=1 // pred_check_branch
      %36 = sbr.rel (0) target = $region13
    $region12: #{tpu_custom_call.1} parent=1 // pred_region
      %s38 = ssub.s32 128, 128
      %39 = vsyncadd [#allocation6], %s38
      %s41 = sshll.u32 [#allocation7], 4
      %s42 = int_to_ptr.vmem [resolvable:$true] %s41
      %44 = dma.hbm_to_vmem [thread:$0]  %s2, 128, %s42, [#allocation6]
    $region13: #{tpu_custom_call.1} parent=1 // pred_fallthru
      _
    // Predicated region
    $region14: #{tpu_custom_call.1} parent=1 // pred_check
      _
    $region15: #{tpu_custom_call.1} parent=1 // pred_check_branch
      %46 = sbr.rel (0) target = $region17
    $region16: #{tpu_custom_call.1} parent=1 // pred_region
      %47 = dma.done [#allocation3], 512
    $region17: #{tpu_custom_call.1} parent=1 // pred_fallthru
      _
    // Predicated region
    $region18: #{tpu_custom_call.1} parent=1 // pred_check
      _
    $region19: #{tpu_custom_call.1} parent=1 // pred_check_branch
      %49 = sbr.rel (0) target = $region21
    $region20: #{tpu_custom_call.1} parent=1 // pred_region
      %50 = dma.done [#allocation6], 512
    $region21: #{tpu_custom_call.1} parent=1 // pred_fallthru
      _
    // Predicated region
    $region22: #{tpu_custom_call.1} parent=1 // pred_check
      _
    $region23: #{tpu_custom_call.1} parent=1 // pred_check_branch
      %52 = sbr.rel (0) target = $region25
    $region24: #{tpu_custom_call.1} parent=1 // pred_region
      %53 = dma.done [#allocation6], 128
    $region25: #{tpu_custom_call.1} parent=1 // pred_fallthru
      _
    %v54 = vld [vmem:[#allocation2] sm:$0xff]
    %v55 = vld [vmem:[#allocation2 + $0x8] sm:$0xff]
    %v56 = vld [vmem:[#allocation2 + $0x10] sm:$0xff]
    %v57 = vld [vmem:[#allocation2 + $0x18] sm:$0xff]
    %v58 = vld [vmem:[#allocation5] sm:$0xff]
    %v59 = vld [vmem:[#allocation5 + $0x8] sm:$0xff]
    %v60 = vld [vmem:[#allocation5 + $0x10] sm:$0xff]
    %v61 = vld [vmem:[#allocation5 + $0x18] sm:$0xff]
    %v62 = vld [vmem:[#allocation7] sm:$0xff]
    %v63 = vmax.f32 %v54, 0.0
    %v64 = vmax.f32 %v55, 0.0
    %v65 = vmax.f32 %v56, 0.0
    %v66 = vmax.f32 %v57, 0.0
    %v67 = vmul.f32 %v54, %v58
    %v68 = vmul.f32 %v55, %v59
    %v69 = vmul.f32 %v56, %v60
    %v70 = vmul.f32 %v57, %v61
    %v71 = vsub.f32 %v63, %v67
    %v72 = vsub.f32 %v64, %v68
    %v73 = vsub.f32 %v65, %v69
    %v74 = vsub.f32 %v66, %v70
    %v75 = vand.u32 2147483647, %v54
    %v76 = vand.u32 2147483647, %v55
    %v77 = vand.u32 2147483647, %v56
    %v78 = vand.u32 2147483647, %v57
    %v79 = vsub.f32 0.0, %v75
    %v80 = vsub.f32 0.0, %v76
    %v81 = vsub.f32 0.0, %v77
    %v82 = vsub.f32 0.0, %v78
    %v83 = vmul.f32 %v79, 1.442695
    %v84 = vpow.pop %v83
    %v85 = vmul.f32 %v80, 1.442695
    %v86 = vpow.pop %v85
    %v87 = vmul.f32 %v81, 1.442695
    %v88 = vpow.pop %v87
    %v89 = vmul.f32 %v82, 1.442695
    %v90 = vpow.pop %v89
    %v91 = vadd.f32 %v84, 1.0
    %v92 = vlog2.pop %v91
    %v93 = vmul.f32 %v92, 0.6931472
    %v94 = vmul.f32 -0.5, %v84
    %v95 = vadd.f32 %v94, 1.0
    %v96 = vmul.f32 %v95, %v84
    %v97 = vand.u32 2147483647, %v84
    %vm98 = vcmp.lt.f32.partialorder %v97, 0.0004427343
    %v99 = vsel %vm98, %v96, %v93
    %v100 = vadd.f32 %v86, 1.0
    %v101 = vlog2.pop %v100
    %v102 = vmul.f32 %v101, 0.6931472
    %v103 = vmul.f32 -0.5, %v86
    %v104 = vadd.f32 %v103, 1.0
    %v105 = vmul.f32 %v104, %v86
    %v106 = vand.u32 2147483647, %v86
    %vm107 = vcmp.lt.f32.partialorder %v106, 0.0004427343
    %v108 = vsel %vm107, %v105, %v102
    %v109 = vadd.f32 %v88, 1.0
    %v110 = vlog2.pop %v109
    %v111 = vmul.f32 %v110, 0.6931472
    %v112 = vmul.f32 -0.5, %v88
    %v113 = vadd.f32 %v112, 1.0
    %v114 = vmul.f32 %v113, %v88
    %v115 = vand.u32 2147483647, %v88
    %vm116 = vcmp.lt.f32.partialorder %v115, 0.0004427343
    %v117 = vsel %vm116, %v114, %v111
    %v118 = vadd.f32 %v90, 1.0
    %v119 = vlog2.pop %v118
    %v120 = vmul.f32 %v119, 0.6931472
    %v121 = vmul.f32 -0.5, %v90
    %v122 = vadd.f32 %v121, 1.0
    %v123 = vmul.f32 %v122, %v90
    %v124 = vand.u32 2147483647, %v90
    %vm125 = vcmp.lt.f32.partialorder %v124, 0.0004427343
    %v126 = vsel %vm125, %v123, %v120
    %v127 = vadd.f32 %v71, %v99
    %v128 = vadd.f32 %v72, %v108
    %v129 = vadd.f32 %v73, %v117
    %v130 = vadd.f32 %v74, %v126
    %v131 = vmul.f32 %v127, %v62
    %v132 = vmul.f32 %v128, %v62
    %v133 = vmul.f32 %v129, %v62
    %v134 = vmul.f32 %v130, %v62
    %v135 = vadd.f32 %v131, %v132
    %v136 = vadd.f32 %v135, %v133
    %v137 = vadd.f32 %v136, %v134
    %138 = vst [vmem:[#allocation8] sm:$0xff] %v137
    // Predicated region
    $region26: #{tpu_custom_call.1} parent=1 // pred_check
      _
    $region27: #{tpu_custom_call.1} parent=1 // pred_check_branch
      %140 = sbr.rel (0) target = $region29
    $region28: #{tpu_custom_call.1} parent=1 // pred_region
      %s142 = ssub.s32 128, 128
      %143 = vsyncadd [#allocation4], %s142
      %s145 = sshll.u32 [#allocation8], 4
      %s146 = int_to_ptr.vmem [resolvable:$true] %s145
      %148 = dma.vmem_to_hbm [thread:$0]  %s146, 128, %s3, [#allocation4]
    $region29: #{tpu_custom_call.1} parent=1 // pred_fallthru
      _
    // Predicated region
    $region30: #{tpu_custom_call.1} parent=1 // pred_check
      _
    $region31: #{tpu_custom_call.1} parent=1 // pred_check_branch
      %150 = sbr.rel (0) target = $region33
    $region32: #{tpu_custom_call.1} parent=1 // pred_region
      %151 = dma.done [#allocation4], 128
    $region33: #{tpu_custom_call.1} parent=1 // pred_fallthru
      _
    %152 = vsyncpa [#allocation3], 1
    %153 = vsyncpa [#allocation6], 1
    %154 = vsyncpa [#allocation4], 1

</llo_original>
